<compile_context>
chip_gen: v6e
topology: v6e:2x2x1
jax: 0.10.0
libtpu: 0.0.40
codegen_flags: <defaults>
</compile_context>

<pallas_src>
import functools

import numpy as np
import jax
import jax.numpy as jnp
from jax import lax
from jax.experimental import pallas as pl
from jax.experimental.pallas import tpu as pltpu

EMBED_DIM = 32
H_MAX = 8.0                       # args.h_max
TIMESTEP = 0.5                    # args.timestep
NUM_SAMPLES = int(H_MAX / TIMESTEP) + 1
TRAIN_TD_MAX = 50.0               # stand-in for dataset's train_td_max normaliser
EPS = 1e-7
_HP = jax.lax.Precision.HIGHEST


# ---------------------------------------------------------------------------
# Fused kernel: lambda_src / lambda_dst over a node tile + (once) return time.
# ---------------------------------------------------------------------------
def _decoder_kernel(esum_ref, ev_ref, rt_ref, t_ref,
                    lam_src_ref, lam_dst_ref, rtp_ref):
    f32 = jnp.float32

    def softplus(x):
        # == log(1+exp(-x)) + x of the reference, but overflow-safe.
        return jnp.log(1.0 + jnp.exp(-jnp.abs(x))) + jnp.maximum(x, 0.0)

    # ---- Hawkes intensities over this node tile (pure VPU/EUP) -------------
    esum = esum_ref[...]                                   # [2, TN] 0.5*(Ea+Eb) per k
    ev = ev_ref[...]                                       # [B, 5]  per-event pack
    k_is1 = ev[:, 0:1] > 0.5                               # [B, 1]  (et > 0)
    row_src = ev[:, 1:2]                                   # bias + alpha*exp(-w_t*td) folded in
    row_dst = ev[:, 2:3]
    psi = ev[:, 3:4]
    ipsi = ev[:, 4:5]                                      # 1/(psi+eps)

    node = jnp.where(k_is1, esum[1:2, :], esum[0:1, :])    # [B, TN] branch picked per event
    lam_src_ref[...] = (psi * softplus((row_src + node) * ipsi)).astype(lam_src_ref.dtype)
    lam_dst_ref[...] = (psi * softplus((row_dst + node) * ipsi)).astype(lam_dst_ref.dtype)

    # ---- return-time prediction: tiny [S, B] problem, runs ONCE (grid step 0)
    @pl.when(pl.program_id(0) == 0)
    def _():
        rt = rt_ref[...]                                   # [5, B]
        g0, alpha_k, wt_k = rt[0:1, :], rt[1:2, :], rt[2:3, :]
        psi_k, ipsi_k = rt[3:4, :], rt[4:5, :]
        tp = t_ref[...]                                    # [S, 2]
        t_norm = tp[:, 0:1]                                # t_grid / train_td_max
        t_w = tp[:, 1:2]                                   # t_grid * trapezoid weights

        g = g0 + alpha_k * jnp.exp(-wt_k * t_norm)         # [S, B]
        lam_t = psi_k * softplus(g * ipsi_k)               # 0.5*(lam+lam) == lam
        S, Bdim = lam_t.shape
        # inclusive cumsum + trapezoid fold as a short unrolled VPU loop
        # (exact f32, no MXU); runs once per pallas_call.
        integ = jnp.zeros((1, Bdim), f32)
        acc = jnp.zeros((1, Bdim), f32)
        for s in range(S):                                 # S is static (17)
            lam_s = lam_t[s:s + 1, :]
            integ = integ + TIMESTEP * lam_s
            acc = acc + t_w[s:s + 1, :] * lam_s * jnp.exp(-integ)
        rtp_ref[...] = acc[None, :, :]                     # block (1, 1, B)

    @pl.when(pl.program_id(0) != 0)
    def _():
        # Keep every output block written (only block 0 is consumed).
        rtp_ref[...] = jnp.zeros_like(rtp_ref)


# ---------------------------------------------------------------------------
# Wrapper: gathers, branch pre-selection, tiny projections, pallas_call glue.
# ---------------------------------------------------------------------------
def decoder_forward(all_embeddings, assoc, src, pos_dst, neg_dst,
                    last_update, cur_time, et, params, *,
                    node_tile=2048, out_dtype=jnp.float32):
    del neg_dst  # unused in the reference forward
    omega_w, omega_b, psi, alpha, w_t = params
    f32 = jnp.float32

    all_emb = all_embeddings.astype(f32)
    N, D = all_emb.shape
    B = src.shape[0]
    S = NUM_SAMPLES
    assert B % 8 == 0, "batch must be a multiple of 8 (f32 sublane alignment)"

    z_src = all_emb[assoc[src]]                          # [B, D]
    z_dst = all_emb[assoc[pos_dst]]                      # [B, D]
    td_src = (cur_time - last_update[assoc[src]]).astype(f32)
    td_dst = (cur_time - last_update[assoc[pos_dst]]).astype(f32)
    k = (et > 0).astype(jnp.int32)                       # [B]

    # omega_k : Linear(2D -> 1); wa acts on z_u, wb on z_v.
    wa = omega_w[:, :D].astype(f32)                      # [2, D]
    wb = omega_w[:, D:].astype(f32)                      # [2, D]

    # Per-node projections for both branches (one small hoisted XLA matmul).
    Eab = jnp.dot(jnp.concatenate([wa, wb], axis=0), all_emb.T, precision=_HP)  # [4, N]
    Esum = 0.5 * (Eab[:2] + Eab[2:])                     # [2, N]

    # Per-event projections with the Hawkes branch already selected.
    wa_k, wb_k = wa[k], wb[k]                            # [B, D]
    Sa = jnp.sum(z_src * wa_k, axis=1)
    Sb = jnp.sum(z_src * wb_k, axis=1)
    Da = jnp.sum(z_dst * wa_k, axis=1)
    Db = jnp.sum(z_dst * wb_k, axis=1)
    b_k = omega_b.astype(f32)[k]
    psi_k = psi.astype(f32)[k]
    alpha_k = alpha.astype(f32)[k]
    wt_k = w_t.astype(f32)[k]
    inv_psi_k = 1.0 / (psi_k + EPS)

    inv_td_max = 1.0 / TRAIN_TD_MAX
    row_src = 0.5 * (Sa + Sb) + b_k + alpha_k * jnp.exp(-wt_k * td_src * inv_td_max)
    row_dst = 0.5 * (Da + Db) + b_k + alpha_k * jnp.exp(-wt_k * td_dst * inv_td_max)
    rt_g0 = 0.5 * (Sa + Sb + Da + Db) + b_k              # return-time base (bias folded in)

    # Packed per-event inputs: one DMA / one VMEM tile instead of five [B,1]s.
    ev_pack = jnp.stack([k.astype(f32), row_src, row_dst, psi_k, inv_psi_k], axis=1)  # [B, 5]
    rt_pack = jnp.stack([rt_g0, alpha_k, wt_k, psi_k, inv_psi_k], axis=0)             # [5, B]

    t_grid = jnp.linspace(0.0, H_MAX, S).astype(f32)
    trap_w = jnp.full((S,), TIMESTEP, dtype=f32)
    trap_w = trap_w.at[0].set(0.5 * TIMESTEP).at[-1].set(0.5 * TIMESTEP)
    t_pack = jnp.stack([t_grid * inv_td_max, t_grid * trap_w], axis=1)                # [S, 2]

    TN = min(node_tile, N)
    assert N % TN == 0, "num_nodes must be a multiple of the node tile"
    assert TN == N or TN % 128 == 0, "node tile must be a multiple of 128 (lane-dense stores)"
    G = N // TN

    out_bytes = jnp.dtype(out_dtype).itemsize
    cost = pl.CostEstimate(
        flops=16 * B * N,
        transcendentals=4 * B * N + 3 * S * B,
        bytes_accessed=2 * B * N * out_bytes + 8 * N + 4 * G * B + 4 * (5 * B + B * 5 + 2 * S),
    )

    lam_src, lam_dst, rtp3 = pl.pallas_call(
        _decoder_kernel,
        grid=(G,),
        in_specs=[
            pl.BlockSpec((2, TN), lambda j: (0, j)),     # Esum node tile
            pl.BlockSpec((B, 5), lambda j: (0, 0)),      # per-event pack
            pl.BlockSpec((5, B), lambda j: (0, 0)),      # return-time per-event pack
            pl.BlockSpec((S, 2), lambda j: (0, 0)),      # t_norm | trapezoid-weighted t
        ],
        out_specs=[
            pl.BlockSpec((B, TN), lambda j: (0, j)),
            pl.BlockSpec((B, TN), lambda j: (0, j)),
            pl.BlockSpec((1, 1, B), lambda j: (j, 0, 0)),
        ],
        out_shape=[
            jax.ShapeDtypeStruct((B, N), out_dtype),
            jax.ShapeDtypeStruct((B, N), out_dtype),
            jax.ShapeDtypeStruct((G, 1, B), f32),
        ],
        compiler_params=pltpu.CompilerParams(dimension_semantics=("parallel",)),
        cost_estimate=cost,
    )(Esum, ev_pack, rt_pack, t_pack)

    return lam_src, lam_dst, rtp3[0, 0]


# ---------------------------------------------------------------------------
# Pure-JAX reference (mirrors the torch code literally) for verification
# ---------------------------------------------------------------------------
def _hawkes_ref(z_u, z_v, et, td, omega_w, omega_b, psi, alpha, w_t):
    k = (et > 0).astype(jnp.int32)
    z_uv = jnp.concatenate([z_u, z_v], axis=1)
    z_vu = jnp.concatenate([z_v, z_u], axis=1)
    g_uv_all = jnp.dot(z_uv, omega_w.T, precision=_HP) + omega_b        # [M, 2]
    g_vu_all = jnp.dot(z_vu, omega_w.T, precision=_HP) + omega_b
    g_uv = jnp.take_along_axis(g_uv_all, k[:, None], axis=1)[:, 0]
    g_vu = jnp.take_along_axis(g_vu_all, k[:, None], axis=1)[:, 0]
    g = 0.5 * (g_uv + g_vu)
    td_norm = td / TRAIN_TD_MAX
    g = g + alpha[k] * jnp.exp(-w_t[k] * td_norm)
    g_psi = g / (psi[k] + EPS)
    return psi[k] * (jnp.log(1.0 + jnp.exp(-g_psi)) + g_psi)


def decoder_forward_ref(all_emb, assoc, src, pos_dst, last_update, cur_time, et, params):
    omega_w, omega_b, psi, alpha, w_t = params
    N, D = all_emb.shape
    B = src.shape[0]
    S = NUM_SAMPLES
    z_src = all_emb[assoc[src]]
    z_dst = all_emb[assoc[pos_dst]]
    td_src = cur_time - last_update[assoc[src]]
    td_dst = cur_time - last_update[assoc[pos_dst]]
    hk = functools.partial(_hawkes_ref, omega_w=omega_w, omega_b=omega_b,
                           psi=psi, alpha=alpha, w_t=w_t)

    lam_src = hk(jnp.repeat(z_src, N, 0), jnp.tile(all_emb, (B, 1)),
                 jnp.repeat(et, N), jnp.repeat(td_src, N)).reshape(B, N)
    lam_dst = hk(jnp.tile(all_emb, (B, 1)), jnp.repeat(z_dst, N, 0),
                 jnp.repeat(et, N), jnp.repeat(td_dst, N)).reshape(B, N)

    t_grid = jnp.linspace(0.0, H_MAX, S).astype(jnp.float32)
    all_td = jnp.repeat(t_grid, B)
    eu = jnp.tile(z_src, (S, 1))
    ev = jnp.tile(z_dst, (S, 1))
    lam_t = hk(eu, ev, jnp.tile(et, S), all_td).reshape(S, B)
    intensity = 0.5 * (lam_t + lam_t)
    integral = jnp.cumsum(TIMESTEP * intensity, axis=0)
    density = intensity * jnp.exp(-integral)
    t_sample = all_td.reshape(S, B) * density
    rtp = (TIMESTEP * 0.5 * (t_sample[:-1] + t_sample[1:])).sum(axis=0)
    return lam_src, lam_dst, rtp


# ---------------------------------------------------------------------------
if __name__ == "__main__":
    key = jax.random.PRNGKey(0)
    B, N, D = 8, 256, EMBED_DIM
    keys = jax.random.split(key, 10)

    # Deterministic parameter init (shapes from Decoder.__init__):
    bound = 1.0 / np.sqrt(2 * D)
    omega_w = jax.random.uniform(keys[0], (2, 2 * D), jnp.float32, -bound, bound)
    omega_b = jax.random.uniform(keys[1], (2,), jnp.float32, -bound, bound)
    psi = 0.5 * jnp.ones((2,), jnp.float32)
    alpha = jax.random.uniform(keys[2], (2,), jnp.float32)
    w_t = jax.random.uniform(keys[3], (2,), jnp.float32)
    params = (omega_w, omega_b, psi, alpha, w_t)

    # Deterministic inputs:
    all_emb = jax.random.normal(keys[4], (N, D), jnp.float32)
    assoc = jax.random.permutation(keys[5], N).astype(jnp.int32)
    src = jax.random.randint(keys[6], (B,), 0, N, jnp.int32)
    pos_dst = jax.random.randint(keys[7], (B,), 0, N, jnp.int32)
    neg_dst = jax.random.randint(keys[8], (B,), 0, N, jnp.int32)
    last_update = jax.random.uniform(keys[9], (N,), jnp.float32, 0.0, 10.0)
    cur_time = 12.0 + jnp.arange(B, dtype=jnp.float32)
    et = jnp.array([0, 1, 2, 0, 1, 0, 2, 1], jnp.int32)

    ref_src, ref_dst, ref_rtp = decoder_forward_ref(
        all_emb, assoc, src, pos_dst, last_update, cur_time, et, params)

    # Production path: one big node tile (TN = N here); for large graphs
    # node_tile >= 1024 (default 2048) keeps steps near the HBM roofline.
    fwd_big = jax.jit(decoder_forward)
    # Tiled path: node_tile=128 -> G=2 exercises the grid, the pl.when-gated
    # return-time block, and megacore-style block indexing.
    fwd_tiled = jax.jit(functools.partial(decoder_forward, node_tile=128))

    for fwd in (fwd_big, fwd_tiled):
        lam_src, lam_dst, rtp = fwd(all_emb, assoc, src, pos_dst, neg_dst,
                                    last_update, cur_time, et, params)
        jax.block_until_ready((lam_src, lam_dst, rtp))
        np.testing.assert_allclose(np.asarray(lam_src), np.asarray(ref_src), rtol=5e-3, atol=5e-3)
        np.testing.assert_allclose(np.asarray(lam_dst), np.asarray(ref_dst), rtol=5e-3, atol=5e-3)
        np.testing.assert_allclose(np.asarray(rtp), np.asarray(ref_rtp), rtol=5e-3, atol=5e-3)

    print("KERNEL_OK")
</pallas_src>

<mosaic_0001>
module attributes {stable_mosaic.version = 11 : i64} {
  func.func @_decoder_kernel(%arg0: i32, %arg1: memref<2x256xf32, #tpu.memory_space<vmem>>, %arg2: memref<8x5xf32, #tpu.memory_space<vmem>>, %arg3: memref<5x8xf32, #tpu.memory_space<vmem>>, %arg4: memref<17x2xf32, #tpu.memory_space<vmem>>, %arg5: memref<8x256xf32, #tpu.memory_space<vmem>>, %arg6: memref<8x256xf32, #tpu.memory_space<vmem>>, %arg7: memref<1x1x8xf32, #tpu.memory_space<vmem>>) attributes {dimension_semantics = [#tpu.dimension_semantics<parallel>], iteration_bounds = array<i64: 1>, scalar_prefetch = 0 : i64, scratch_operands = 0 : i64, tpu.core_type = #tpu.core_type<tc>, window_params = [{transform_indices = @transform_0, window_bounds = array<i64: 2, 256>}, {pipeline_mode = #tpu.pipeline_mode<synchronous>, transform_indices = @transform_1, window_bounds = array<i64: 8, 5>}, {pipeline_mode = #tpu.pipeline_mode<synchronous>, transform_indices = @transform_2, window_bounds = array<i64: 5, 8>}, {pipeline_mode = #tpu.pipeline_mode<synchronous>, transform_indices = @transform_3, window_bounds = array<i64: 17, 2>}, {transform_indices = @transform_4, window_bounds = array<i64: 8, 256>}, {transform_indices = @transform_5, window_bounds = array<i64: 8, 256>}, {transform_indices = @transform_6, window_bounds = array<i64: 1, 1, 8>}]} {
    %c0 = arith.constant 0 : index
    %c0_0 = arith.constant 0 : index
    %0 = vector.load %arg1[%c0, %c0_0] : memref<2x256xf32, #tpu.memory_space<vmem>>, vector<2x256xf32>
    %c0_1 = arith.constant 0 : index
    %c0_2 = arith.constant 0 : index
    %1 = vector.load %arg2[%c0_1, %c0_2] : memref<8x5xf32, #tpu.memory_space<vmem>>, vector<8x5xf32>
    %2 = vector.extract_strided_slice %1 {offsets = [0, 0], sizes = [8, 1], strides = [1, 1]} : vector<8x5xf32> to vector<8x1xf32>
    %cst = arith.constant 5.000000e-01 : f32
    %3 = vector.broadcast %cst : f32 to vector<8x1xf32>
    %4 = arith.cmpf ogt, %2, %3 : vector<8x1xf32>
    %5 = vector.extract_strided_slice %1 {offsets = [0, 1], sizes = [8, 1], strides = [1, 1]} : vector<8x5xf32> to vector<8x1xf32>
    %6 = vector.extract_strided_slice %1 {offsets = [0, 2], sizes = [8, 1], strides = [1, 1]} : vector<8x5xf32> to vector<8x1xf32>
    %7 = vector.extract_strided_slice %1 {offsets = [0, 3], sizes = [8, 1], strides = [1, 1]} : vector<8x5xf32> to vector<8x1xf32>
    %8 = vector.extract_strided_slice %1 {offsets = [0, 4], sizes = [8, 1], strides = [1, 1]} : vector<8x5xf32> to vector<8x1xf32>
    %9 = vector.extract_strided_slice %0 {offsets = [1, 0], sizes = [1, 256], strides = [1, 1]} : vector<2x256xf32> to vector<1x256xf32>
    %10 = vector.extract_strided_slice %0 {offsets = [0, 0], sizes = [1, 256], strides = [1, 1]} : vector<2x256xf32> to vector<1x256xf32>
    %11 = vector.shape_cast %4 : vector<8x1xi1> to vector<8x1xi1>
    %12 = vector.broadcast %11 : vector<8x1xi1> to vector<8x256xi1>
    %13 = vector.shape_cast %9 : vector<1x256xf32> to vector<1x256xf32>
    %14 = vector.broadcast %13 : vector<1x256xf32> to vector<8x256xf32>
    %15 = vector.shape_cast %10 : vector<1x256xf32> to vector<1x256xf32>
    %16 = vector.broadcast %15 : vector<1x256xf32> to vector<8x256xf32>
    %17 = arith.select %12, %14, %16 : vector<8x256xi1>, vector<8x256xf32>
    %18 = vector.broadcast %5 : vector<8x1xf32> to vector<8x256xf32>
    %19 = arith.addf %18, %17 : vector<8x256xf32>
    %20 = vector.broadcast %8 : vector<8x1xf32> to vector<8x256xf32>
    %21 = arith.mulf %19, %20 : vector<8x256xf32>
    %22 = math.absf %21 : vector<8x256xf32>
    %cst_3 = arith.constant 0.000000e+00 : f32
    %23 = vector.broadcast %cst_3 : f32 to vector<8x256xf32>
    %24 = arith.subf %23, %22 : vector<8x256xf32>
    %25 = math.exp %24 : vector<8x256xf32>
    %cst_4 = arith.constant 1.000000e+00 : f32
    %26 = vector.broadcast %cst_4 : f32 to vector<8x256xf32>
    %27 = arith.addf %26, %25 : vector<8x256xf32>
    %28 = math.log %27 : vector<8x256xf32>
    %cst_5 = arith.constant 0.000000e+00 : f32
    %29 = vector.broadcast %cst_5 : f32 to vector<8x256xf32>
    %30 = arith.maximumf %21, %29 : vector<8x256xf32>
    %31 = arith.addf %28, %30 : vector<8x256xf32>
    %32 = vector.broadcast %7 : vector<8x1xf32> to vector<8x256xf32>
    %33 = arith.mulf %32, %31 : vector<8x256xf32>
    %c0_6 = arith.constant 0 : index
    %c0_7 = arith.constant 0 : index
    %34 = vector.load %arg5[%c0_6, %c0_7] : memref<8x256xf32, #tpu.memory_space<vmem>>, vector<8x256xf32>
    tpu.vector_store %arg5[%c0_6, %c0_7], %33 {strides = array<i32>} : memref<8x256xf32, #tpu.memory_space<vmem>>, vector<8x256xf32>,
    %35 = vector.broadcast %6 : vector<8x1xf32> to vector<8x256xf32>
    %36 = arith.addf %35, %17 : vector<8x256xf32>
    %37 = vector.broadcast %8 : vector<8x1xf32> to vector<8x256xf32>
    %38 = arith.mulf %36, %37 : vector<8x256xf32>
    %39 = math.absf %38 : vector<8x256xf32>
    %cst_8 = arith.constant 0.000000e+00 : f32
    %40 = vector.broadcast %cst_8 : f32 to vector<8x256xf32>
    %41 = arith.subf %40, %39 : vector<8x256xf32>
    %42 = math.exp %41 : vector<8x256xf32>
    %cst_9 = arith.constant 1.000000e+00 : f32
    %43 = vector.broadcast %cst_9 : f32 to vector<8x256xf32>
    %44 = arith.addf %43, %42 : vector<8x256xf32>
    %45 = math.log %44 : vector<8x256xf32>
    %cst_10 = arith.constant 0.000000e+00 : f32
    %46 = vector.broadcast %cst_10 : f32 to vector<8x256xf32>
    %47 = arith.maximumf %38, %46 : vector<8x256xf32>
    %48 = arith.addf %45, %47 : vector<8x256xf32>
    %49 = vector.broadcast %7 : vector<8x1xf32> to vector<8x256xf32>
    %50 = arith.mulf %49, %48 : vector<8x256xf32>
    %c0_11 = arith.constant 0 : index
    %c0_12 = arith.constant 0 : index
    %51 = vector.load %arg6[%c0_11, %c0_12] : memref<8x256xf32, #tpu.memory_space<vmem>>, vector<8x256xf32>
    tpu.vector_store %arg6[%c0_11, %c0_12], %50 {strides = array<i32>} : memref<8x256xf32, #tpu.memory_space<vmem>>, vector<8x256xf32>,
    %c0_i32 = arith.constant 0 : i32
    %52 = arith.cmpi eq, %arg0, %c0_i32 : i32
    %53 = arith.extui %52 : i1 to i32
    %c0_i32_13 = arith.constant 0 : i32
    %54 = arith.cmpi ne, %53, %c0_i32_13 : i32
    scf.if %54 {
      %c0_16 = arith.constant 0 : index
      %c0_17 = arith.constant 0 : index
      %58 = vector.load %arg3[%c0_16, %c0_17] : memref<5x8xf32, #tpu.memory_space<vmem>>, vector<5x8xf32>
      %59 = vector.extract_strided_slice %58 {offsets = [0, 0], sizes = [1, 8], strides = [1, 1]} : vector<5x8xf32> to vector<1x8xf32>
      %60 = vector.extract_strided_slice %58 {offsets = [1, 0], sizes = [1, 8], strides = [1, 1]} : vector<5x8xf32> to vector<1x8xf32>
      %61 = vector.extract_strided_slice %58 {offsets = [2, 0], sizes = [1, 8], strides = [1, 1]} : vector<5x8xf32> to vector<1x8xf32>
      %62 = vector.extract_strided_slice %58 {offsets = [3, 0], sizes = [1, 8], strides = [1, 1]} : vector<5x8xf32> to vector<1x8xf32>
      %63 = vector.extract_strided_slice %58 {offsets = [4, 0], sizes = [1, 8], strides = [1, 1]} : vector<5x8xf32> to vector<1x8xf32>
      %c0_18 = arith.constant 0 : index
      %c0_19 = arith.constant 0 : index
      %64 = vector.load %arg4[%c0_18, %c0_19] : memref<17x2xf32, #tpu.memory_space<vmem>>, vector<17x2xf32>
      %65 = vector.extract_strided_slice %64 {offsets = [0, 0], sizes = [17, 1], strides = [1, 1]} : vector<17x2xf32> to vector<17x1xf32>
      %66 = vector.extract_strided_slice %64 {offsets = [0, 1], sizes = [17, 1], strides = [1, 1]} : vector<17x2xf32> to vector<17x1xf32>
      %cst_20 = arith.constant 0.000000e+00 : f32
      %67 = vector.broadcast %cst_20 : f32 to vector<1x8xf32>
      %68 = arith.subf %67, %61 : vector<1x8xf32>
      %69 = vector.broadcast %68 : vector<1x8xf32> to vector<17x8xf32>
      %70 = vector.broadcast %65 : vector<17x1xf32> to vector<17x8xf32>
      %71 = arith.mulf %69, %70 : vector<17x8xf32>
      %72 = math.exp %71 : vector<17x8xf32>
      %73 = vector.broadcast %60 : vector<1x8xf32> to vector<17x8xf32>
      %74 = arith.mulf %73, %72 : vector<17x8xf32>
      %75 = vector.broadcast %59 : vector<1x8xf32> to vector<17x8xf32>
      %76 = arith.addf %75, %74 : vector<17x8xf32>
      %77 = vector.broadcast %63 : vector<1x8xf32> to vector<17x8xf32>
      %78 = arith.mulf %76, %77 : vector<17x8xf32>
      %79 = math.absf %78 : vector<17x8xf32>
      %cst_21 = arith.constant 0.000000e+00 : f32
      %80 = vector.broadcast %cst_21 : f32 to vector<17x8xf32>
      %81 = arith.subf %80, %79 : vector<17x8xf32>
      %82 = math.exp %81 : vector<17x8xf32>
      %cst_22 = arith.constant 1.000000e+00 : f32
      %83 = vector.broadcast %cst_22 : f32 to vector<17x8xf32>
      %84 = arith.addf %83, %82 : vector<17x8xf32>
      %85 = math.log %84 : vector<17x8xf32>
      %cst_23 = arith.constant 0.000000e+00 : f32
      %86 = vector.broadcast %cst_23 : f32 to vector<17x8xf32>
      %87 = arith.maximumf %78, %86 : vector<17x8xf32>
      %88 = arith.addf %85, %87 : vector<17x8xf32>
      %89 = vector.broadcast %62 : vector<1x8xf32> to vector<17x8xf32>
      %90 = arith.mulf %89, %88 : vector<17x8xf32>
      %cst_24 = arith.constant 0.000000e+00 : f32
      %91 = vector.broadcast %cst_24 : f32 to vector<1x8xf32>
      %cst_25 = arith.constant 0.000000e+00 : f32
      %92 = vector.broadcast %cst_25 : f32 to vector<1x8xf32>
      %93 = vector.extract_strided_slice %90 {offsets = [0, 0], sizes = [1, 8], strides = [1, 1]} : vector<17x8xf32> to vector<1x8xf32>
      %cst_26 = arith.constant 5.000000e-01 : f32
      %94 = vector.broadcast %cst_26 : f32 to vector<1x8xf32>
      %95 = arith.mulf %94, %93 : vector<1x8xf32>
      %96 = arith.addf %91, %95 : vector<1x8xf32>
      %97 = vector.extract_strided_slice %66 {offsets = [0, 0], sizes = [1, 1], strides = [1, 1]} : vector<17x1xf32> to vector<1x1xf32>
      %98 = vector.broadcast %97 : vector<1x1xf32> to vector<1x8xf32>
      %99 = arith.mulf %98, %93 : vector<1x8xf32>
      %cst_27 = arith.constant 0.000000e+00 : f32
      %100 = vector.broadcast %cst_27 : f32 to vector<1x8xf32>
      %101 = arith.subf %100, %96 : vector<1x8xf32>
      %102 = math.exp %101 : vector<1x8xf32>
      %103 = arith.mulf %99, %102 : vector<1x8xf32>
      %104 = arith.addf %92, %103 : vector<1x8xf32>
      %105 = vector.extract_strided_slice %90 {offsets = [1, 0], sizes = [1, 8], strides = [1, 1]} : vector<17x8xf32> to vector<1x8xf32>
      %cst_28 = arith.constant 5.000000e-01 : f32
      %106 = vector.broadcast %cst_28 : f32 to vector<1x8xf32>
      %107 = arith.mulf %106, %105 : vector<1x8xf32>
      %108 = arith.addf %96, %107 : vector<1x8xf32>
      %109 = vector.extract_strided_slice %66 {offsets = [1, 0], sizes = [1, 1], strides = [1, 1]} : vector<17x1xf32> to vector<1x1xf32>
      %110 = vector.broadcast %109 : vector<1x1xf32> to vector<1x8xf32>
      %111 = arith.mulf %110, %105 : vector<1x8xf32>
      %cst_29 = arith.constant 0.000000e+00 : f32
      %112 = vector.broadcast %cst_29 : f32 to vector<1x8xf32>
      %113 = arith.subf %112, %108 : vector<1x8xf32>
      %114 = math.exp %113 : vector<1x8xf32>
      %115 = arith.mulf %111, %114 : vector<1x8xf32>
      %116 = arith.addf %104, %115 : vector<1x8xf32>
      %117 = vector.extract_strided_slice %90 {offsets = [2, 0], sizes = [1, 8], strides = [1, 1]} : vector<17x8xf32> to vector<1x8xf32>
      %cst_30 = arith.constant 5.000000e-01 : f32
      %118 = vector.broadcast %cst_30 : f32 to vector<1x8xf32>
      %119 = arith.mulf %118, %117 : vector<1x8xf32>
      %120 = arith.addf %108, %119 : vector<1x8xf32>
      %121 = vector.extract_strided_slice %66 {offsets = [2, 0], sizes = [1, 1], strides = [1, 1]} : vector<17x1xf32> to vector<1x1xf32>
      %122 = vector.broadcast %121 : vector<1x1xf32> to vector<1x8xf32>
      %123 = arith.mulf %122, %117 : vector<1x8xf32>
      %cst_31 = arith.constant 0.000000e+00 : f32
      %124 = vector.broadcast %cst_31 : f32 to vector<1x8xf32>
      %125 = arith.subf %124, %120 : vector<1x8xf32>
      %126 = math.exp %125 : vector<1x8xf32>
      %127 = arith.mulf %123, %126 : vector<1x8xf32>
      %128 = arith.addf %116, %127 : vector<1x8xf32>
      %129 = vector.extract_strided_slice %90 {offsets = [3, 0], sizes = [1, 8], strides = [1, 1]} : vector<17x8xf32> to vector<1x8xf32>
      %cst_32 = arith.constant 5.000000e-01 : f32
      %130 = vector.broadcast %cst_32 : f32 to vector<1x8xf32>
      %131 = arith.mulf %130, %129 : vector<1x8xf32>
      %132 = arith.addf %120, %131 : vector<1x8xf32>
      %133 = vector.extract_strided_slice %66 {offsets = [3, 0], sizes = [1, 1], strides = [1, 1]} : vector<17x1xf32> to vector<1x1xf32>
      %134 = vector.broadcast %133 : vector<1x1xf32> to vector<1x8xf32>
      %135 = arith.mulf %134, %129 : vector<1x8xf32>
      %cst_33 = arith.constant 0.000000e+00 : f32
      %136 = vector.broadcast %cst_33 : f32 to vector<1x8xf32>
      %137 = arith.subf %136, %132 : vector<1x8xf32>
      %138 = math.exp %137 : vector<1x8xf32>
      %139 = arith.mulf %135, %138 : vector<1x8xf32>
      %140 = arith.addf %128, %139 : vector<1x8xf32>
      %141 = vector.extract_strided_slice %90 {offsets = [4, 0], sizes = [1, 8], strides = [1, 1]} : vector<17x8xf32> to vector<1x8xf32>
      %cst_34 = arith.constant 5.000000e-01 : f32
      %142 = vector.broadcast %cst_34 : f32 to vector<1x8xf32>
      %143 = arith.mulf %142, %141 : vector<1x8xf32>
      %144 = arith.addf %132, %143 : vector<1x8xf32>
      %145 = vector.extract_strided_slice %66 {offsets = [4, 0], sizes = [1, 1], strides = [1, 1]} : vector<17x1xf32> to vector<1x1xf32>
      %146 = vector.broadcast %145 : vector<1x1xf32> to vector<1x8xf32>
      %147 = arith.mulf %146, %141 : vector<1x8xf32>
      %cst_35 = arith.constant 0.000000e+00 : f32
      %148 = vector.broadcast %cst_35 : f32 to vector<1x8xf32>
      %149 = arith.subf %148, %144 : vector<1x8xf32>
      %150 = math.exp %149 : vector<1x8xf32>
      %151 = arith.mulf %147, %150 : vector<1x8xf32>
      %152 = arith.addf %140, %151 : vector<1x8xf32>
      %153 = vector.extract_strided_slice %90 {offsets = [5, 0], sizes = [1, 8], strides = [1, 1]} : vector<17x8xf32> to vector<1x8xf32>
      %cst_36 = arith.constant 5.000000e-01 : f32
      %154 = vector.broadcast %cst_36 : f32 to vector<1x8xf32>
      %155 = arith.mulf %154, %153 : vector<1x8xf32>
      %156 = arith.addf %144, %155 : vector<1x8xf32>
      %157 = vector.extract_strided_slice %66 {offsets = [5, 0], sizes = [1, 1], strides = [1, 1]} : vector<17x1xf32> to vector<1x1xf32>
      %158 = vector.broadcast %157 : vector<1x1xf32> to vector<1x8xf32>
      %159 = arith.mulf %158, %153 : vector<1x8xf32>
      %cst_37 = arith.constant 0.000000e+00 : f32
      %160 = vector.broadcast %cst_37 : f32 to vector<1x8xf32>
      %161 = arith.subf %160, %156 : vector<1x8xf32>
      %162 = math.exp %161 : vector<1x8xf32>
      %163 = arith.mulf %159, %162 : vector<1x8xf32>
      %164 = arith.addf %152, %163 : vector<1x8xf32>
      %165 = vector.extract_strided_slice %90 {offsets = [6, 0], sizes = [1, 8], strides = [1, 1]} : vector<17x8xf32> to vector<1x8xf32>
      %cst_38 = arith.constant 5.000000e-01 : f32
      %166 = vector.broadcast %cst_38 : f32 to vector<1x8xf32>
      %167 = arith.mulf %166, %165 : vector<1x8xf32>
      %168 = arith.addf %156, %167 : vector<1x8xf32>
      %169 = vector.extract_strided_slice %66 {offsets = [6, 0], sizes = [1, 1], strides = [1, 1]} : vector<17x1xf32> to vector<1x1xf32>
      %170 = vector.broadcast %169 : vector<1x1xf32> to vector<1x8xf32>
      %171 = arith.mulf %170, %165 : vector<1x8xf32>
      %cst_39 = arith.constant 0.000000e+00 : f32
      %172 = vector.broadcast %cst_39 : f32 to vector<1x8xf32>
      %173 = arith.subf %172, %168 : vector<1x8xf32>
      %174 = math.exp %173 : vector<1x8xf32>
      %175 = arith.mulf %171, %174 : vector<1x8xf32>
      %176 = arith.addf %164, %175 : vector<1x8xf32>
      %177 = vector.extract_strided_slice %90 {offsets = [7, 0], sizes = [1, 8], strides = [1, 1]} : vector<17x8xf32> to vector<1x8xf32>
      %cst_40 = arith.constant 5.000000e-01 : f32
      %178 = vector.broadcast %cst_40 : f32 to vector<1x8xf32>
      %179 = arith.mulf %178, %177 : vector<1x8xf32>
      %180 = arith.addf %168, %179 : vector<1x8xf32>
      %181 = vector.extract_strided_slice %66 {offsets = [7, 0], sizes = [1, 1], strides = [1, 1]} : vector<17x1xf32> to vector<1x1xf32>
      %182 = vector.broadcast %181 : vector<1x1xf32> to vector<1x8xf32>
      %183 = arith.mulf %182, %177 : vector<1x8xf32>
      %cst_41 = arith.constant 0.000000e+00 : f32
      %184 = vector.broadcast %cst_41 : f32 to vector<1x8xf32>
      %185 = arith.subf %184, %180 : vector<1x8xf32>
      %186 = math.exp %185 : vector<1x8xf32>
      %187 = arith.mulf %183, %186 : vector<1x8xf32>
      %188 = arith.addf %176, %187 : vector<1x8xf32>
      %189 = vector.extract_strided_slice %90 {offsets = [8, 0], sizes = [1, 8], strides = [1, 1]} : vector<17x8xf32> to vector<1x8xf32>
      %cst_42 = arith.constant 5.000000e-01 : f32
      %190 = vector.broadcast %cst_42 : f32 to vector<1x8xf32>
      %191 = arith.mulf %190, %189 : vector<1x8xf32>
      %192 = arith.addf %180, %191 : vector<1x8xf32>
      %193 = vector.extract_strided_slice %66 {offsets = [8, 0], sizes = [1, 1], strides = [1, 1]} : vector<17x1xf32> to vector<1x1xf32>
      %194 = vector.broadcast %193 : vector<1x1xf32> to vector<1x8xf32>
      %195 = arith.mulf %194, %189 : vector<1x8xf32>
      %cst_43 = arith.constant 0.000000e+00 : f32
      %196 = vector.broadcast %cst_43 : f32 to vector<1x8xf32>
      %197 = arith.subf %196, %192 : vector<1x8xf32>
      %198 = math.exp %197 : vector<1x8xf32>
      %199 = arith.mulf %195, %198 : vector<1x8xf32>
      %200 = arith.addf %188, %199 : vector<1x8xf32>
      %201 = vector.extract_strided_slice %90 {offsets = [9, 0], sizes = [1, 8], strides = [1, 1]} : vector<17x8xf32> to vector<1x8xf32>
      %cst_44 = arith.constant 5.000000e-01 : f32
      %202 = vector.broadcast %cst_44 : f32 to vector<1x8xf32>
      %203 = arith.mulf %202, %201 : vector<1x8xf32>
      %204 = arith.addf %192, %203 : vector<1x8xf32>
      %205 = vector.extract_strided_slice %66 {offsets = [9, 0], sizes = [1, 1], strides = [1, 1]} : vector<17x1xf32> to vector<1x1xf32>
      %206 = vector.broadcast %205 : vector<1x1xf32> to vector<1x8xf32>
      %207 = arith.mulf %206, %201 : vector<1x8xf32>
      %cst_45 = arith.constant 0.000000e+00 : f32
      %208 = vector.broadcast %cst_45 : f32 to vector<1x8xf32>
      %209 = arith.subf %208, %204 : vector<1x8xf32>
      %210 = math.exp %209 : vector<1x8xf32>
      %211 = arith.mulf %207, %210 : vector<1x8xf32>
      %212 = arith.addf %200, %211 : vector<1x8xf32>
      %213 = vector.extract_strided_slice %90 {offsets = [10, 0], sizes = [1, 8], strides = [1, 1]} : vector<17x8xf32> to vector<1x8xf32>
      %cst_46 = arith.constant 5.000000e-01 : f32
      %214 = vector.broadcast %cst_46 : f32 to vector<1x8xf32>
      %215 = arith.mulf %214, %213 : vector<1x8xf32>
      %216 = arith.addf %204, %215 : vector<1x8xf32>
      %217 = vector.extract_strided_slice %66 {offsets = [10, 0], sizes = [1, 1], strides = [1, 1]} : vector<17x1xf32> to vector<1x1xf32>
      %218 = vector.broadcast %217 : vector<1x1xf32> to vector<1x8xf32>
      %219 = arith.mulf %218, %213 : vector<1x8xf32>
      %cst_47 = arith.constant 0.000000e+00 : f32
      %220 = vector.broadcast %cst_47 : f32 to vector<1x8xf32>
      %221 = arith.subf %220, %216 : vector<1x8xf32>
      %222 = math.exp %221 : vector<1x8xf32>
      %223 = arith.mulf %219, %222 : vector<1x8xf32>
      %224 = arith.addf %212, %223 : vector<1x8xf32>
      %225 = vector.extract_strided_slice %90 {offsets = [11, 0], sizes = [1, 8], strides = [1, 1]} : vector<17x8xf32> to vector<1x8xf32>
      %cst_48 = arith.constant 5.000000e-01 : f32
      %226 = vector.broadcast %cst_48 : f32 to vector<1x8xf32>
      %227 = arith.mulf %226, %225 : vector<1x8xf32>
      %228 = arith.addf %216, %227 : vector<1x8xf32>
      %229 = vector.extract_strided_slice %66 {offsets = [11, 0], sizes = [1, 1], strides = [1, 1]} : vector<17x1xf32> to vector<1x1xf32>
      %230 = vector.broadcast %229 : vector<1x1xf32> to vector<1x8xf32>
      %231 = arith.mulf %230, %225 : vector<1x8xf32>
      %cst_49 = arith.constant 0.000000e+00 : f32
      %232 = vector.broadcast %cst_49 : f32 to vector<1x8xf32>
      %233 = arith.subf %232, %228 : vector<1x8xf32>
      %234 = math.exp %233 : vector<1x8xf32>
      %235 = arith.mulf %231, %234 : vector<1x8xf32>
      %236 = arith.addf %224, %235 : vector<1x8xf32>
      %237 = vector.extract_strided_slice %90 {offsets = [12, 0], sizes = [1, 8], strides = [1, 1]} : vector<17x8xf32> to vector<1x8xf32>
      %cst_50 = arith.constant 5.000000e-01 : f32
      %238 = vector.broadcast %cst_50 : f32 to vector<1x8xf32>
      %239 = arith.mulf %238, %237 : vector<1x8xf32>
      %240 = arith.addf %228, %239 : vector<1x8xf32>
      %241 = vector.extract_strided_slice %66 {offsets = [12, 0], sizes = [1, 1], strides = [1, 1]} : vector<17x1xf32> to vector<1x1xf32>
      %242 = vector.broadcast %241 : vector<1x1xf32> to vector<1x8xf32>
      %243 = arith.mulf %242, %237 : vector<1x8xf32>
      %cst_51 = arith.constant 0.000000e+00 : f32
      %244 = vector.broadcast %cst_51 : f32 to vector<1x8xf32>
      %245 = arith.subf %244, %240 : vector<1x8xf32>
      %246 = math.exp %245 : vector<1x8xf32>
      %247 = arith.mulf %243, %246 : vector<1x8xf32>
      %248 = arith.addf %236, %247 : vector<1x8xf32>
      %249 = vector.extract_strided_slice %90 {offsets = [13, 0], sizes = [1, 8], strides = [1, 1]} : vector<17x8xf32> to vector<1x8xf32>
      %cst_52 = arith.constant 5.000000e-01 : f32
      %250 = vector.broadcast %cst_52 : f32 to vector<1x8xf32>
      %251 = arith.mulf %250, %249 : vector<1x8xf32>
      %252 = arith.addf %240, %251 : vector<1x8xf32>
      %253 = vector.extract_strided_slice %66 {offsets = [13, 0], sizes = [1, 1], strides = [1, 1]} : vector<17x1xf32> to vector<1x1xf32>
      %254 = vector.broadcast %253 : vector<1x1xf32> to vector<1x8xf32>
      %255 = arith.mulf %254, %249 : vector<1x8xf32>
      %cst_53 = arith.constant 0.000000e+00 : f32
      %256 = vector.broadcast %cst_53 : f32 to vector<1x8xf32>
      %257 = arith.subf %256, %252 : vector<1x8xf32>
      %258 = math.exp %257 : vector<1x8xf32>
      %259 = arith.mulf %255, %258 : vector<1x8xf32>
      %260 = arith.addf %248, %259 : vector<1x8xf32>
      %261 = vector.extract_strided_slice %90 {offsets = [14, 0], sizes = [1, 8], strides = [1, 1]} : vector<17x8xf32> to vector<1x8xf32>
      %cst_54 = arith.constant 5.000000e-01 : f32
      %262 = vector.broadcast %cst_54 : f32 to vector<1x8xf32>
      %263 = arith.mulf %262, %261 : vector<1x8xf32>
      %264 = arith.addf %252, %263 : vector<1x8xf32>
      %265 = vector.extract_strided_slice %66 {offsets = [14, 0], sizes = [1, 1], strides = [1, 1]} : vector<17x1xf32> to vector<1x1xf32>
      %266 = vector.broadcast %265 : vector<1x1xf32> to vector<1x8xf32>
      %267 = arith.mulf %266, %261 : vector<1x8xf32>
      %cst_55 = arith.constant 0.000000e+00 : f32
      %268 = vector.broadcast %cst_55 : f32 to vector<1x8xf32>
      %269 = arith.subf %268, %264 : vector<1x8xf32>
      %270 = math.exp %269 : vector<1x8xf32>
      %271 = arith.mulf %267, %270 : vector<1x8xf32>
      %272 = arith.addf %260, %271 : vector<1x8xf32>
      %273 = vector.extract_strided_slice %90 {offsets = [15, 0], sizes = [1, 8], strides = [1, 1]} : vector<17x8xf32> to vector<1x8xf32>
      %cst_56 = arith.constant 5.000000e-01 : f32
      %274 = vector.broadcast %cst_56 : f32 to vector<1x8xf32>
      %275 = arith.mulf %274, %273 : vector<1x8xf32>
      %276 = arith.addf %264, %275 : vector<1x8xf32>
      %277 = vector.extract_strided_slice %66 {offsets = [15, 0], sizes = [1, 1], strides = [1, 1]} : vector<17x1xf32> to vector<1x1xf32>
      %278 = vector.broadcast %277 : vector<1x1xf32> to vector<1x8xf32>
      %279 = arith.mulf %278, %273 : vector<1x8xf32>
      %cst_57 = arith.constant 0.000000e+00 : f32
      %280 = vector.broadcast %cst_57 : f32 to vector<1x8xf32>
      %281 = arith.subf %280, %276 : vector<1x8xf32>
      %282 = math.exp %281 : vector<1x8xf32>
      %283 = arith.mulf %279, %282 : vector<1x8xf32>
      %284 = arith.addf %272, %283 : vector<1x8xf32>
      %285 = vector.extract_strided_slice %90 {offsets = [16, 0], sizes = [1, 8], strides = [1, 1]} : vector<17x8xf32> to vector<1x8xf32>
      %cst_58 = arith.constant 5.000000e-01 : f32
      %286 = vector.broadcast %cst_58 : f32 to vector<1x8xf32>
      %287 = arith.mulf %286, %285 : vector<1x8xf32>
      %288 = arith.addf %276, %287 : vector<1x8xf32>
      %289 = vector.extract_strided_slice %66 {offsets = [16, 0], sizes = [1, 1], strides = [1, 1]} : vector<17x1xf32> to vector<1x1xf32>
      %290 = vector.broadcast %289 : vector<1x1xf32> to vector<1x8xf32>
      %291 = arith.mulf %290, %285 : vector<1x8xf32>
      %cst_59 = arith.constant 0.000000e+00 : f32
      %292 = vector.broadcast %cst_59 : f32 to vector<1x8xf32>
      %293 = arith.subf %292, %288 : vector<1x8xf32>
      %294 = math.exp %293 : vector<1x8xf32>
      %295 = arith.mulf %291, %294 : vector<1x8xf32>
      %296 = arith.addf %284, %295 : vector<1x8xf32>
      %297 = vector.shape_cast %296 : vector<1x8xf32> to vector<1x1x8xf32>
      %c0_60 = arith.constant 0 : index
      %c0_61 = arith.constant 0 : index
      %c0_62 = arith.constant 0 : index
      %298 = vector.load %arg7[%c0_60, %c0_61, %c0_62] : memref<1x1x8xf32, #tpu.memory_space<vmem>>, vector<1x1x8xf32>
      tpu.vector_store %arg7[%c0_60, %c0_61, %c0_62], %297 {strides = array<i32>} : memref<1x1x8xf32, #tpu.memory_space<vmem>>, vector<1x1x8xf32>,
    } else {
    }
    %c0_i32_14 = arith.constant 0 : i32
    %55 = arith.cmpi ne, %arg0, %c0_i32_14 : i32
    %56 = arith.extui %55 : i1 to i32
    %c0_i32_15 = arith.constant 0 : i32
    %57 = arith.cmpi ne, %56, %c0_i32_15 : i32
    scf.if %57 {
      %cst_16 = arith.constant 0.000000e+00 : f32
      %58 = vector.broadcast %cst_16 : f32 to vector<1x1x8xf32>
      %c0_17 = arith.constant 0 : index
      %c0_18 = arith.constant 0 : index
      %c0_19 = arith.constant 0 : index
      %59 = vector.load %arg7[%c0_17, %c0_18, %c0_19] : memref<1x1x8xf32, #tpu.memory_space<vmem>>, vector<1x1x8xf32>
      tpu.vector_store %arg7[%c0_17, %c0_18, %c0_19], %58 {strides = array<i32>} : memref<1x1x8xf32, #tpu.memory_space<vmem>>, vector<1x1x8xf32>,
    } else {
    }
    return
  }
  func.func @transform_0(%arg0: i32) -> (i32, i32) {
    %c0_i32 = arith.constant 0 : i32
    %c0_i32_0 = arith.constant 0 : i32
    return %c0_i32, %arg0 : i32, i32
  }
  func.func @transform_1(%arg0: i32) -> (i32, i32) {
    %c0_i32 = arith.constant 0 : i32
    %c0_i32_0 = arith.constant 0 : i32
    %c0_i32_1 = arith.constant 0 : i32
    return %c0_i32, %c0_i32_0 : i32, i32
  }
  func.func @transform_2(%arg0: i32) -> (i32, i32) {
    %c0_i32 = arith.constant 0 : i32
    %c0_i32_0 = arith.constant 0 : i32
    %c0_i32_1 = arith.constant 0 : i32
    return %c0_i32, %c0_i32_0 : i32, i32
  }
  func.func @transform_3(%arg0: i32) -> (i32, i32) {
    %c0_i32 = arith.constant 0 : i32
    %c0_i32_0 = arith.constant 0 : i32
    %c0_i32_1 = arith.constant 0 : i32
    return %c0_i32, %c0_i32_0 : i32, i32
  }
  func.func @transform_4(%arg0: i32) -> (i32, i32) {
    %c0_i32 = arith.constant 0 : i32
    %c0_i32_0 = arith.constant 0 : i32
    return %c0_i32, %arg0 : i32, i32
  }
  func.func @transform_5(%arg0: i32) -> (i32, i32) {
    %c0_i32 = arith.constant 0 : i32
    %c0_i32_0 = arith.constant 0 : i32
    return %c0_i32, %arg0 : i32, i32
  }
  func.func @transform_6(%arg0: i32) -> (i32, i32, i32) {
    %c0_i32 = arith.constant 0 : i32
    %c0_i32_0 = arith.constant 0 : i32
    %c0_i32_1 = arith.constant 0 : i32
    return %arg0, %c0_i32, %c0_i32_0 : i32, i32, i32
  }
}

</mosaic_0001>

<llo_original>
// kernel: decoder_forward.1
$region0: #{decoder_forward.1}
  #allocation0 [shape = 'u32[]', space=smem, size = 0x4, offset = 0x4, fixed_abs, tag = 'smem constant byte address 0x4 - core index']
  #allocation1 [shape = 'u32[144,128]{1,0:T(1,128)}', space=vmem, size = 0x12000, scoped, tag = 'internal scratch']
  %s0 = inlined_call_operand.vmem [shape: f32[2,256], index: 0, kind: input, shape index: {}]
  %s1 = inlined_call_operand.vmem [shape: f32[8,5], index: 1, kind: input, shape index: {}]
  %s2 = inlined_call_operand.vmem [shape: f32[5,8], index: 2, kind: input, shape index: {}]
  %s3 = inlined_call_operand.vmem [shape: f32[17,2], index: 3, kind: input, shape index: {}]
  %s4 = inlined_call_operand.hbm [shape: f32[8,256], index: 4, kind: output, shape index: {0}]
  %s5 = inlined_call_operand.hbm [shape: f32[8,256], index: 5, kind: output, shape index: {1}]
  %s6 = inlined_call_operand.hbm [shape: f32[1,1,8], index: 6, kind: output, shape index: {2}]
  %7 = xla_tuple %s4, %s5, %s6
  %s8 = sld [smem:[#allocation0]]
  $region50: #{decoder_forward.1} parent=0
    _
  %s10 = ssub.s32 1, %s8
  %s11 = scalar_select 0, %s10, %s8
  $region1: #{decoder_forward.1} parent=0
    #allocation2 [shape = 'u8[8192]{0}', space=vmem, size = 0x2000, scoped, tag = 'output window, operand 0, single buffered']
    #allocation3 [shape = 's32[1]{0}', space=sflag, size = 0x4, scoped, tag = 'scoped memory for decoder_forward.1']
    #allocation4 [shape = 'u8[8192]{0}', space=vmem, size = 0x2000, scoped, tag = 'output window, operand 1, single buffered']
    #allocation5 [shape = 's32[1]{0}', space=sflag, size = 0x4, scoped, tag = 'scoped memory for decoder_forward.1']
    #allocation6 [shape = 'u8[512]{0}', space=vmem, size = 0x400, scoped, tag = 'output window, operand 2, single buffered']
    %12 = vsyncpa [#allocation3], 0
    %13 = vsyncpa [#allocation5], 0
    // Predicated region
    $region2: #{decoder_forward.1} parent=1 // pred_check
      _
    $region3: #{decoder_forward.1} parent=1 // pred_check_branch
      %15 = sbr.rel (0) target = $region5
    $region4: #{decoder_forward.1} parent=1 // pred_region
      _
    $region5: #{decoder_forward.1} parent=1 // pred_fallthru
      _
    // Predicated region
    $region6: #{decoder_forward.1} parent=1 // pred_check
      _
    $region7: #{decoder_forward.1} parent=1 // pred_check_branch
      %17 = sbr.rel (0) target = $region9
    $region8: #{decoder_forward.1} parent=1 // pred_region
      _
    $region9: #{decoder_forward.1} parent=1 // pred_fallthru
      _
    // Predicated region
    $region10: #{decoder_forward.1} parent=1 // pred_check
      _
    $region11: #{decoder_forward.1} parent=1 // pred_check_branch
      %19 = sbr.rel (0) target = $region13
    $region12: #{decoder_forward.1} parent=1 // pred_region
      _
    $region13: #{decoder_forward.1} parent=1 // pred_fallthru
      _
    // Predicated region
    $region14: #{decoder_forward.1} parent=1 // pred_check
      _
    $region15: #{decoder_forward.1} parent=1 // pred_check_branch
      %21 = sbr.rel (0) target = $region17
    $region16: #{decoder_forward.1} parent=1 // pred_region
      _
    $region17: #{decoder_forward.1} parent=1 // pred_fallthru
      _
    %v22 = vld [vmem:[%s0] sm:$0xf]
    %v23 = vld [vmem:[%s1] sm:$0xff]
    %vm24 = vcmp.gt.f32.partialorder %v23, 0.5
    %v25 = vsel %vm24, 1, 0
    %26 = vset.pattern.permute.xlu0 0
    %27 = vperm.xlu0 %26, %v25
    %v28 = vpop.permute.xlu0 %27
    %vm29 = vcmp.eq.s32.totalorder %v28, 1
    %v31 = vlaneseq
    %v32 = vshrl.u32 %v31, 7
    %v33 = vsub.s32 1, %v32
    %v34 = vrot.slane %v22, %v33
    %v35 = vlaneseq
    %v36 = vshrl.u32 %v35, 7
    %v37 = vsub.s32 3, %v36
    %v38 = vrot.slane %v22, %v37
    %v41 = vlaneseq
    %v42 = vshrl.u32 %v41, 7
    %v43 = vsub.s32 1, %v42
    %v44 = vrot.slane %v34, %v43
    %v45 = vlaneseq
    %v46 = vshrl.u32 %v45, 7
    %v47 = vsub.s32 1, %v46
    %v48 = vrot.slane %v38, %v47
    %v49 = vlaneseq
    %v50 = vshrl.u32 %v49, 7
    %v51 = vsub.s32 0, %v50
    %v52 = vrot.slane %v22, %v51
    %v53 = vlaneseq
    %v54 = vshrl.u32 %v53, 7
    %v55 = vsub.s32 2, %v54
    %v56 = vrot.slane %v22, %v55
    %v59 = vlaneseq
    %v60 = vshrl.u32 %v59, 7
    %v61 = vsub.s32 0, %v60
    %v62 = vrot.slane %v52, %v61
    %v63 = vlaneseq
    %v64 = vshrl.u32 %v63, 7
    %v65 = vsub.s32 0, %v64
    %v66 = vrot.slane %v56, %v65
    %v67 = vsel %vm29, %v44, %v62
    %v68 = vsel %vm29, %v48, %v66
    %70 = vset.pattern.permute.xlu0 1
    %71 = vperm.xlu0 %70, %v23
    %v72 = vpop.permute.xlu0 %71
    %v74 = vadd.f32 %v72, %v67
    %v75 = vadd.f32 %v72, %v68
    %76 = vset.pattern.permute.xlu0 4
    %77 = vperm.xlu0 %76, %v23
    %v78 = vpop.permute.xlu0 %77
    %v80 = vmul.f32 %v74, %v78
    %v81 = vmul.f32 %v75, %v78
    %v82 = vand.u32 2147483647, %v80
    %v83 = vand.u32 2147483647, %v81
    %v84 = vsub.f32 0.0, %v82
    %v85 = vsub.f32 0.0, %v83
    %v86 = vmul.f32 %v84, 1.442695
    %v87 = vpow.pop %v86
    %v88 = vmul.f32 %v85, 1.442695
    %v89 = vpow.pop %v88
    %v90 = vadd.f32 %v87, 1.0
    %v91 = vadd.f32 %v89, 1.0
    %v92 = vlog2.pop %v90
    %v93 = vmul.f32 %v92, 0.6931472
    %v94 = vlog2.pop %v91
    %v95 = vmul.f32 %v94, 0.6931472
    %v96 = vmax.f32 %v80, 0.0
    %v97 = vmax.f32 %v81, 0.0
    %v98 = vadd.f32 %v93, %v96
    %v99 = vadd.f32 %v95, %v97
    %100 = vset.pattern.permute.xlu0 3
    %101 = vperm.xlu0 %100, %v23
    %v102 = vpop.permute.xlu0 %101
    %v104 = vmul.f32 %v102, %v98
    %v105 = vmul.f32 %v102, %v99
    %106 = vst [vmem:[#allocation2] sm:$0xff] %v104
    %107 = vst [vmem:[#allocation2 + $0x8] sm:$0xff] %v105
    %108 = vset.pattern.permute.xlu0 2
    %109 = vperm.xlu0 %108, %v23
    %v110 = vpop.permute.xlu0 %109
    %v112 = vadd.f32 %v110, %v67
    %v113 = vadd.f32 %v110, %v68
    %v114 = vmul.f32 %v112, %v78
    %v115 = vmul.f32 %v113, %v78
    %v116 = vand.u32 2147483647, %v114
    %v117 = vand.u32 2147483647, %v115
    %v118 = vsub.f32 0.0, %v116
    %v119 = vsub.f32 0.0, %v117
    %v120 = vmul.f32 %v118, 1.442695
    %v121 = vpow.pop %v120
    %v122 = vmul.f32 %v119, 1.442695
    %v123 = vpow.pop %v122
    %v124 = vadd.f32 %v121, 1.0
    %v125 = vadd.f32 %v123, 1.0
    %v126 = vlog2.pop %v124
    %v127 = vmul.f32 %v126, 0.6931472
    %v128 = vlog2.pop %v125
    %v129 = vmul.f32 %v128, 0.6931472
    %v130 = vmax.f32 %v114, 0.0
    %v131 = vmax.f32 %v115, 0.0
    %v132 = vadd.f32 %v127, %v130
    %v133 = vadd.f32 %v129, %v131
    %v134 = vmul.f32 %v102, %v132
    %v135 = vmul.f32 %v102, %v133
    %136 = vst [vmem:[#allocation4] sm:$0xff] %v134
    %137 = vst [vmem:[#allocation4 + $0x8] sm:$0xff] %v135
    %p138 = scmp.eq.s32.totalorder 0, 0
    // Predicated region
    $region18: #{decoder_forward.1} parent=1 // pred_check
      %p139 = pneg %p138
    $region19: #{decoder_forward.1} parent=1 // pred_check_branch
      %141 = sbr.rel (%p139) target = $region21
    $region20: #{decoder_forward.1} parent=1 // pred_region
      %v142 = vld [vmem:[%s2] sm:$0x1f]
      %v143 = vld [vmem:[%s3] sm:$0xff]
      %v144 = vld [vmem:[%s3 + $0x8] sm:$0xff]
      %v145 = vld [vmem:[%s3 + $0x10] sm:$0x1]
      %v146 = vsub.f32 0.0, %v142
      %v147 = vlaneseq
      %v148 = vshrl.u32 %v147, 7
      %v149 = vsub.s32 2, %v148
      %v150 = vrot.slane %v146, %v149
      %152 = vset.pattern.permute.xlu0 0
      %153 = vperm.xlu0 %152, %v143
      %v154 = vpop.permute.xlu0 %153
      %157 = vset.pattern.permute.xlu0 0
      %158 = vperm.xlu0 %157, %v144
      %v159 = vpop.permute.xlu0 %158
      %162 = vset.pattern.permute.xlu0 0
      %163 = vperm.xlu0 %162, %v145
      %v164 = vpop.permute.xlu0 %163
      %v166 = vmul.f32 %v150, %v154
      %v167 = vmul.f32 %v150, %v159
      %v168 = vmul.f32 %v150, %v164
      %v169 = vmul.f32 %v166, 1.442695
      %v170 = vpow.pop %v169
      %v171 = vmul.f32 %v167, 1.442695
      %v172 = vpow.pop %v171
      %v173 = vmul.f32 %v168, 1.442695
      %v174 = vpow.pop %v173
      %v175 = vlaneseq
      %v176 = vshrl.u32 %v175, 7
      %v177 = vsub.s32 1, %v176
      %v178 = vrot.slane %v142, %v177
      %v179 = vmul.f32 %v178, %v170
      %v180 = vmul.f32 %v178, %v172
      %v181 = vmul.f32 %v178, %v174
      %v182 = vlaneseq
      %v183 = vshrl.u32 %v182, 7
      %v184 = vsub.s32 0, %v183
      %v185 = vrot.slane %v142, %v184
      %v186 = vadd.f32 %v185, %v179
      %v187 = vadd.f32 %v185, %v180
      %v188 = vadd.f32 %v185, %v181
      %v189 = vlaneseq
      %v190 = vshrl.u32 %v189, 7
      %v191 = vsub.s32 4, %v190
      %v192 = vrot.slane %v142, %v191
      %v193 = vmul.f32 %v186, %v192
      %v194 = vmul.f32 %v187, %v192
      %v195 = vmul.f32 %v188, %v192
      %v196 = vand.u32 2147483647, %v193
      %v197 = vand.u32 2147483647, %v194
      %v198 = vand.u32 2147483647, %v195
      %v199 = vsub.f32 0.0, %v196
      %v200 = vsub.f32 0.0, %v197
      %v201 = vsub.f32 0.0, %v198
      %v202 = vmul.f32 %v199, 1.442695
      %v203 = vpow.pop %v202
      %v204 = vmul.f32 %v200, 1.442695
      %v205 = vpow.pop %v204
      %v206 = vmul.f32 %v201, 1.442695
      %v207 = vpow.pop %v206
      %v208 = vadd.f32 %v203, 1.0
      %v209 = vadd.f32 %v205, 1.0
      %v210 = vadd.f32 %v207, 1.0
      %v211 = vlog2.pop %v208
      %v212 = vmul.f32 %v211, 0.6931472
      %v213 = vlog2.pop %v209
      %v214 = vmul.f32 %v213, 0.6931472
      %v215 = vlog2.pop %v210
      %v216 = vmul.f32 %v215, 0.6931472
      %v217 = vmax.f32 %v193, 0.0
      %v218 = vmax.f32 %v194, 0.0
      %v219 = vmax.f32 %v195, 0.0
      %v220 = vadd.f32 %v212, %v217
      %v221 = vadd.f32 %v214, %v218
      %v222 = vadd.f32 %v216, %v219
      %v223 = vlaneseq
      %v224 = vshrl.u32 %v223, 7
      %v225 = vsub.s32 3, %v224
      %v226 = vrot.slane %v142, %v225
      %v227 = vmul.f32 %v226, %v220
      %v228 = vmul.f32 %v226, %v221
      %v229 = vmul.f32 %v226, %v222
      %v230 = vmul.f32 %v227, 0.5
      %v231 = vadd.f32 %v230, 0.0
      %232 = vset.pattern.permute.xlu0 1
      %233 = vperm.xlu0 %232, %v143
      %v234 = vpop.permute.xlu0 %233
      %v236 = vmul.f32 %v234, %v227
      %v237 = vsub.f32 0.0, %v231
      %v238 = vmul.f32 %v237, 1.442695
      %v239 = vpow.pop %v238
      %v240 = vmul.f32 %v236, %v239
      %v241 = vadd.f32 %v240, 0.0
      %v243 = vrot.slane %v230, 1
      %v245 = vadd.f32 %v231, %v243
      %v246 = vsub.f32 0.0, %v245
      %v247 = vmul.f32 %v246, 1.442695
      %v248 = vpow.pop %v247
      %v250 = vrot.slane %v248, 7
      %v252 = vmul.f32 %v236, %v250
      %v254 = vrot.slane %v252, 1
      %v256 = vadd.f32 %v241, %v254
      %v257 = vrot.slane %v230, 2
      %v259 = vadd.f32 %v245, %v257
      %v260 = vsub.f32 0.0, %v259
      %v261 = vmul.f32 %v260, 1.442695
      %v262 = vpow.pop %v261
      %v264 = vrot.slane %v262, 6
      %v266 = vmul.f32 %v236, %v264
      %v268 = vrot.slane %v266, 2
      %v270 = vadd.f32 %v256, %v268
      %v271 = vrot.slane %v230, 3
      %v273 = vadd.f32 %v259, %v271
      %v274 = vsub.f32 0.0, %v273
      %v275 = vmul.f32 %v274, 1.442695
      %v276 = vpow.pop %v275
      %v278 = vrot.slane %v276, 5
      %v280 = vmul.f32 %v236, %v278
      %v282 = vrot.slane %v280, 3
      %v284 = vadd.f32 %v270, %v282
      %v285 = vrot.slane %v230, 4
      %v287 = vadd.f32 %v273, %v285
      %v288 = vsub.f32 0.0, %v287
      %v289 = vmul.f32 %v288, 1.442695
      %v290 = vpow.pop %v289
      %v292 = vrot.slane %v290, 4
      %v294 = vmul.f32 %v236, %v292
      %v296 = vrot.slane %v294, 4
      %v298 = vadd.f32 %v284, %v296
      %v299 = vrot.slane %v230, 5
      %v301 = vadd.f32 %v287, %v299
      %v302 = vsub.f32 0.0, %v301
      %v303 = vmul.f32 %v302, 1.442695
      %v304 = vpow.pop %v303
      %v306 = vrot.slane %v304, 3
      %v308 = vmul.f32 %v236, %v306
      %v310 = vrot.slane %v308, 5
      %v312 = vadd.f32 %v298, %v310
      %v313 = vrot.slane %v230, 6
      %v315 = vadd.f32 %v301, %v313
      %v316 = vsub.f32 0.0, %v315
      %v317 = vmul.f32 %v316, 1.442695
      %v318 = vpow.pop %v317
      %v320 = vrot.slane %v318, 2
      %v322 = vmul.f32 %v236, %v320
      %v324 = vrot.slane %v322, 6
      %v326 = vadd.f32 %v312, %v324
      %v327 = vrot.slane %v230, 7
      %v329 = vadd.f32 %v315, %v327
      %v330 = vsub.f32 0.0, %v329
      %v331 = vmul.f32 %v330, 1.442695
      %v332 = vpow.pop %v331
      %v334 = vrot.slane %v332, 1
      %v336 = vmul.f32 %v236, %v334
      %v338 = vrot.slane %v336, 7
      %v340 = vadd.f32 %v326, %v338
      %v341 = vmul.f32 %v228, 0.5
      %v342 = vadd.f32 %v329, %v341
      %343 = vset.pattern.permute.xlu0 1
      %344 = vperm.xlu0 %343, %v144
      %v345 = vpop.permute.xlu0 %344
      %v347 = vmul.f32 %v345, %v228
      %v348 = vsub.f32 0.0, %v342
      %v349 = vmul.f32 %v348, 1.442695
      %v350 = vpow.pop %v349
      %v351 = vmul.f32 %v347, %v350
      %v352 = vadd.f32 %v340, %v351
      %v354 = vrot.slane %v341, 1
      %v356 = vadd.f32 %v342, %v354
      %v357 = vsub.f32 0.0, %v356
      %v358 = vmul.f32 %v357, 1.442695
      %v359 = vpow.pop %v358
      %v361 = vrot.slane %v359, 7
      %v363 = vmul.f32 %v347, %v361
      %v365 = vrot.slane %v363, 1
      %v367 = vadd.f32 %v352, %v365
      %v368 = vrot.slane %v341, 2
      %v370 = vadd.f32 %v356, %v368
      %v371 = vsub.f32 0.0, %v370
      %v372 = vmul.f32 %v371, 1.442695
      %v373 = vpow.pop %v372
      %v375 = vrot.slane %v373, 6
      %v377 = vmul.f32 %v347, %v375
      %v379 = vrot.slane %v377, 2
      %v381 = vadd.f32 %v367, %v379
      %v382 = vrot.slane %v341, 3
      %v384 = vadd.f32 %v370, %v382
      %v385 = vsub.f32 0.0, %v384
      %v386 = vmul.f32 %v385, 1.442695
      %v387 = vpow.pop %v386
      %v389 = vrot.slane %v387, 5
      %v391 = vmul.f32 %v347, %v389
      %v393 = vrot.slane %v391, 3
      %v395 = vadd.f32 %v381, %v393
      %v396 = vrot.slane %v341, 4
      %v398 = vadd.f32 %v384, %v396
      %v399 = vsub.f32 0.0, %v398
      %v400 = vmul.f32 %v399, 1.442695
      %v401 = vpow.pop %v400
      %v403 = vrot.slane %v401, 4
      %v405 = vmul.f32 %v347, %v403
      %v407 = vrot.slane %v405, 4
      %v409 = vadd.f32 %v395, %v407
      %v410 = vrot.slane %v341, 5
      %v412 = vadd.f32 %v398, %v410
      %v413 = vsub.f32 0.0, %v412
      %v414 = vmul.f32 %v413, 1.442695
      %v415 = vpow.pop %v414
      %v417 = vrot.slane %v415, 3
      %v419 = vmul.f32 %v347, %v417
      %v421 = vrot.slane %v419, 5
      %v423 = vadd.f32 %v409, %v421
      %v424 = vrot.slane %v341, 6
      %v426 = vadd.f32 %v412, %v424
      %v427 = vsub.f32 0.0, %v426
      %v428 = vmul.f32 %v427, 1.442695
      %v429 = vpow.pop %v428
      %v431 = vrot.slane %v429, 2
      %v433 = vmul.f32 %v347, %v431
      %v435 = vrot.slane %v433, 6
      %v437 = vadd.f32 %v423, %v435
      %v438 = vrot.slane %v341, 7
      %v440 = vadd.f32 %v426, %v438
      %v441 = vsub.f32 0.0, %v440
      %v442 = vmul.f32 %v441, 1.442695
      %v443 = vpow.pop %v442
      %v445 = vrot.slane %v443, 1
      %v447 = vmul.f32 %v347, %v445
      %v449 = vrot.slane %v447, 7
      %v451 = vadd.f32 %v437, %v449
      %v452 = vmul.f32 %v229, 0.5
      %v453 = vadd.f32 %v440, %v452
      %454 = vset.pattern.permute.xlu0 1
      %455 = vperm.xlu0 %454, %v145
      %v456 = vpop.permute.xlu0 %455
      %v458 = vmul.f32 %v456, %v229
      %v459 = vsub.f32 0.0, %v453
      %v460 = vmul.f32 %v459, 1.442695
      %v461 = vpow.pop %v460
      %v462 = vmul.f32 %v458, %v461
      %v463 = vadd.f32 %v451, %v462
      %vm464 = vcmask 57344
      %465 = vst.msk [vmem:[#allocation6] sm:$0x1] %vm464, %v463
    $region21: #{decoder_forward.1} parent=1 // pred_fallthru
      _
    %p466 = scmp.ne.s32.totalorder 0, 0
    // Predicated region
    $region22: #{decoder_forward.1} parent=1 // pred_check
      %p467 = pneg %p466
    $region23: #{decoder_forward.1} parent=1 // pred_check_branch
      %469 = sbr.rel (%p467) target = $region25
    $region24: #{decoder_forward.1} parent=1 // pred_region
      %vm470 = vcmask 57344
      %471 = vst.msk [vmem:[#allocation6] sm:$0x1] %vm470, 0.0
    $region25: #{decoder_forward.1} parent=1 // pred_fallthru
      _
    // Predicated region
    $region26: #{decoder_forward.1} parent=1 // pred_check
      _
    $region27: #{decoder_forward.1} parent=1 // pred_check_branch
      %473 = sbr.rel (0) target = $region29
    $region28: #{decoder_forward.1} parent=1 // pred_region
      %s475 = ssub.s32 256, 256
      %476 = vsyncadd [#allocation3], %s475
      %s478 = sshll.u32 [#allocation2], 4
      %s479 = int_to_ptr.vmem [resolvable:$true] %s478
      %481 = dma.vmem_to_hbm [thread:$0]  %s479, 256, %s4, [#allocation3]
    $region29: #{decoder_forward.1} parent=1 // pred_fallthru
      _
    // Predicated region
    $region30: #{decoder_forward.1} parent=1 // pred_check
      _
    $region31: #{decoder_forward.1} parent=1 // pred_check_branch
      %483 = sbr.rel (0) target = $region33
    $region32: #{decoder_forward.1} parent=1 // pred_region
      %s485 = ssub.s32 256, 256
      %486 = vsyncadd [#allocation5], %s485
      %s488 = sshll.u32 [#allocation4], 4
      %s489 = int_to_ptr.vmem [resolvable:$true] %s488
      %491 = dma.vmem_to_hbm [thread:$0]  %s489, 256, %s5, [#allocation5]
    $region33: #{decoder_forward.1} parent=1 // pred_fallthru
      _
    // Predicated region
    $region34: #{decoder_forward.1} parent=1 // pred_check
      _
    $region35: #{decoder_forward.1} parent=1 // pred_check_branch
      %493 = sbr.rel (0) target = $region37
    $region36: #{decoder_forward.1} parent=1 // pred_region
      %s495 = ssub.s32 16, 16
      %496 = vsyncadd [#allocation5], %s495
      %s498 = sshll.u32 [#allocation6], 4
      %s499 = int_to_ptr.vmem [resolvable:$true] %s498
      %501 = dma.vmem_to_hbm [thread:$0]  %s499, 16, %s6, [#allocation5]
    $region37: #{decoder_forward.1} parent=1 // pred_fallthru
      _
    // Predicated region
    $region38: #{decoder_forward.1} parent=1 // pred_check
      _
    $region39: #{decoder_forward.1} parent=1 // pred_check_branch
      %503 = sbr.rel (0) target = $region41
    $region40: #{decoder_forward.1} parent=1 // pred_region
      %504 = dma.done [#allocation3], 256
    $region41: #{decoder_forward.1} parent=1 // pred_fallthru
      _
    // Predicated region
    $region42: #{decoder_forward.1} parent=1 // pred_check
      _
    $region43: #{decoder_forward.1} parent=1 // pred_check_branch
      %506 = sbr.rel (0) target = $region45
    $region44: #{decoder_forward.1} parent=1 // pred_region
      %507 = dma.done [#allocation5], 256
    $region45: #{decoder_forward.1} parent=1 // pred_fallthru
      _
    // Predicated region
    $region46: #{decoder_forward.1} parent=1 // pred_check
      _
    $region47: #{decoder_forward.1} parent=1 // pred_check_branch
      %509 = sbr.rel (0) target = $region49
    $region48: #{decoder_forward.1} parent=1 // pred_region
      %510 = dma.done [#allocation5], 16
    $region49: #{decoder_forward.1} parent=1 // pred_fallthru
      _
    %511 = vsyncpa [#allocation3], 1
    %512 = vsyncpa [#allocation5], 1

</llo_original>
